<compile_context>
chip_gen: v7x
topology: tpu7x:2x2x1
jax: 0.10.0
libtpu: 0.0.40
codegen_flags: <defaults>
</compile_context>

<pallas_src>
import jax
import jax.numpy as jnp
from jax.experimental import pallas as pl
from jax.experimental.pallas import tpu as pltpu

GAMMA = 2.0   # module default; kernel uses explicit squares (gamma == 2 fast path)
ALPHA = 0.25


def focal_loss_kernel(x_ref, t_ref, o_ref):
    # x_ref: (C, TILE_N) logits, t_ref: (1, TILE_N) targets, o_ref: (1, TILE_N) loss
    x = x_ref[...].astype(jnp.float32)                    # (C, TN)
    t = t_ref[...].astype(jnp.float32)                    # (1, TN)

    # log-space softmax over the class (sublane) axis; only class-1 quantities kept
    m = jnp.max(x, axis=0, keepdims=True)                 # (1, TN)
    e = jnp.exp(x - m)                                     # (C, TN)
    denom = jnp.sum(e, axis=0, keepdims=True)              # (1, TN)
    log_denom = jnp.log(denom)                             # (1, TN)

    x1 = x[1:2, :]                                         # (1, TN) == logits[:, 1]
    e1 = e[1:2, :]
    log_p = (x1 - m) - log_denom                           # log softmax(x)[1]
    log_1mp = jnp.log(denom - e1) - log_denom              # log(1 - p)
    p = jnp.exp(log_p)
    one_m_p = 1.0 - p

    # gamma == 2 -> squares (VALU) instead of float pow (EUP exp/log chain)
    loss = (-ALPHA * (one_m_p * one_m_p) * (t * log_p)
            - (1.0 - ALPHA) * (p * p) * ((1.0 - t) * log_1mp))
    o_ref[...] = loss.astype(o_ref.dtype)


def _round_up(x, m):
    return ((x + m - 1) // m) * m


def focal_loss(logits, target, *, tile_n=512):
    """logits: (N, C), target: (N,) in {0, 1}. Returns (N,) elementwise focal loss."""
    n, c = logits.shape
    tn = min(tile_n, _round_up(n, 128))          # lane-aligned tile, capped for small N
    n_pad = _round_up(n, tn)

    x_t = jnp.transpose(logits)                  # (C, N): N on the lane axis
    t_row = target.astype(jnp.float32).reshape(1, n)
    if n_pad != n:
        # zero-pad: softmax of zeros is finite, so padded lanes never produce NaN/inf
        x_t = jnp.pad(x_t, ((0, 0), (0, n_pad - n)))
        t_row = jnp.pad(t_row, ((0, 0), (0, n_pad - n)))

    out = pl.pallas_call(
        focal_loss_kernel,
        out_shape=jax.ShapeDtypeStruct((1, n_pad), jnp.float32),
        grid_spec=pltpu.PrefetchScalarGridSpec(
            num_scalar_prefetch=0,
            grid=(n_pad // tn,),
            in_specs=[
                pl.BlockSpec((c, tn), lambda i: (0, i)),
                pl.BlockSpec((1, tn), lambda i: (0, i)),
            ],
            out_specs=pl.BlockSpec((1, tn), lambda i: (0, i)),
        ),
        compiler_params=pltpu.CompilerParams(
            dimension_semantics=("parallel",)),
    )(x_t, t_row)
    return out[0, :n]


def focal_loss_ref(logits, target):
    pt = jax.nn.softmax(logits.astype(jnp.float32), axis=1)
    p = pt[:, 1]
    t = target.astype(jnp.float32)
    return (-ALPHA * (1.0 - p) ** GAMMA * (t * jnp.log(p))
            - (1.0 - ALPHA) * p ** GAMMA * ((1.0 - t) * jnp.log(1.0 - p)))


if __name__ == "__main__":
    key = jax.random.PRNGKey(0)

    # Case 1: multi-tile (N a multiple of the tile size)
    k1, k2, k3, k4 = jax.random.split(key, 4)
    N1, C1 = 384, 8
    logits1 = jax.random.normal(k1, (N1, C1), dtype=jnp.float32)
    target1 = jax.random.bernoulli(k2, 0.5, (N1,)).astype(jnp.float32)
    out1 = jax.block_until_ready(focal_loss(logits1, target1, tile_n=128))
    ref1 = focal_loss_ref(logits1, target1)
    assert out1.shape == (N1,)
    assert jnp.allclose(out1, ref1, atol=1e-5, rtol=1e-5)

    # Case 2: ragged N (exercises padding path), binary C
    N2, C2 = 200, 2
    logits2 = jax.random.normal(k3, (N2, C2), dtype=jnp.float32)
    target2 = jax.random.bernoulli(k4, 0.5, (N2,)).astype(jnp.float32)
    out2 = jax.block_until_ready(focal_loss(logits2, target2, tile_n=128))
    ref2 = focal_loss_ref(logits2, target2)
    assert out2.shape == (N2,)
    assert jnp.allclose(out2, ref2, atol=1e-5, rtol=1e-5)

    print("KERNEL_OK")
</pallas_src>

<mosaic_0001>
module attributes {stable_mosaic.version = 11 : i64} {
  func.func @focal_loss_kernel(%arg0: i32, %arg1: memref<8x128xf32, #tpu.memory_space<vmem>>, %arg2: memref<1x128xf32, #tpu.memory_space<vmem>>, %arg3: memref<1x128xf32, #tpu.memory_space<vmem>>) attributes {dimension_semantics = [#tpu.dimension_semantics<parallel>], iteration_bounds = array<i64: 3>, scalar_prefetch = 0 : i64, scratch_operands = 0 : i64, tpu.core_type = #tpu.core_type<tc>, window_params = [{transform_indices = @transform_0, window_bounds = array<i64: 8, 128>}, {transform_indices = @transform_1, window_bounds = array<i64: 1, 128>}, {transform_indices = @transform_2, window_bounds = array<i64: 1, 128>}]} {
    %c0 = arith.constant 0 : index
    %c0_0 = arith.constant 0 : index
    %0 = vector.load %arg1[%c0, %c0_0] : memref<8x128xf32, #tpu.memory_space<vmem>>, vector<8x128xf32>
    %c0_1 = arith.constant 0 : index
    %c0_2 = arith.constant 0 : index
    %1 = vector.load %arg2[%c0_1, %c0_2] : memref<1x128xf32, #tpu.memory_space<vmem>>, vector<1x128xf32>
    %cst = arith.constant dense<0xFF800000> : vector<128xf32>
    %2 = vector.multi_reduction <maximumf>, %0, %cst [0] : vector<8x128xf32> to vector<128xf32>
    %3 = vector.shape_cast %2 : vector<128xf32> to vector<1x128xf32>
    %4 = vector.broadcast %3 : vector<1x128xf32> to vector<8x128xf32>
    %5 = arith.subf %0, %4 : vector<8x128xf32>
    %6 = math.exp %5 : vector<8x128xf32>
    %cst_3 = arith.constant dense<0.000000e+00> : vector<128xf32>
    %7 = vector.multi_reduction <add>, %6, %cst_3 [0] : vector<8x128xf32> to vector<128xf32>
    %8 = vector.shape_cast %7 : vector<128xf32> to vector<1x128xf32>
    %9 = math.log %8 : vector<1x128xf32>
    %10 = vector.extract_strided_slice %0 {offsets = [1, 0], sizes = [1, 128], strides = [1, 1]} : vector<8x128xf32> to vector<1x128xf32>
    %11 = vector.extract_strided_slice %6 {offsets = [1, 0], sizes = [1, 128], strides = [1, 1]} : vector<8x128xf32> to vector<1x128xf32>
    %12 = arith.subf %10, %3 : vector<1x128xf32>
    %13 = arith.subf %12, %9 : vector<1x128xf32>
    %14 = arith.subf %8, %11 : vector<1x128xf32>
    %15 = math.log %14 : vector<1x128xf32>
    %16 = arith.subf %15, %9 : vector<1x128xf32>
    %17 = math.exp %13 : vector<1x128xf32>
    %cst_4 = arith.constant 1.000000e+00 : f32
    %18 = vector.broadcast %cst_4 : f32 to vector<1x128xf32>
    %19 = arith.subf %18, %17 : vector<1x128xf32>
    %20 = arith.mulf %19, %19 : vector<1x128xf32>
    %cst_5 = arith.constant -2.500000e-01 : f32
    %21 = vector.broadcast %cst_5 : f32 to vector<1x128xf32>
    %22 = arith.mulf %21, %20 : vector<1x128xf32>
    %23 = arith.mulf %1, %13 : vector<1x128xf32>
    %24 = arith.mulf %22, %23 : vector<1x128xf32>
    %25 = arith.mulf %17, %17 : vector<1x128xf32>
    %cst_6 = arith.constant 7.500000e-01 : f32
    %26 = vector.broadcast %cst_6 : f32 to vector<1x128xf32>
    %27 = arith.mulf %26, %25 : vector<1x128xf32>
    %cst_7 = arith.constant 1.000000e+00 : f32
    %28 = vector.broadcast %cst_7 : f32 to vector<1x128xf32>
    %29 = arith.subf %28, %1 : vector<1x128xf32>
    %30 = arith.mulf %29, %16 : vector<1x128xf32>
    %31 = arith.mulf %27, %30 : vector<1x128xf32>
    %32 = arith.subf %24, %31 : vector<1x128xf32>
    %c0_8 = arith.constant 0 : index
    %c0_9 = arith.constant 0 : index
    %33 = vector.load %arg3[%c0_8, %c0_9] : memref<1x128xf32, #tpu.memory_space<vmem>>, vector<1x128xf32>
    tpu.vector_store %arg3[%c0_8, %c0_9], %32 {strides = array<i32>} : memref<1x128xf32, #tpu.memory_space<vmem>>, vector<1x128xf32>,
    return
  }
  func.func @transform_0(%arg0: i32) -> (i32, i32) {
    %c0_i32 = arith.constant 0 : i32
    %c0_i32_0 = arith.constant 0 : i32
    return %c0_i32, %arg0 : i32, i32
  }
  func.func @transform_1(%arg0: i32) -> (i32, i32) {
    %c0_i32 = arith.constant 0 : i32
    %c0_i32_0 = arith.constant 0 : i32
    return %c0_i32, %arg0 : i32, i32
  }
  func.func @transform_2(%arg0: i32) -> (i32, i32) {
    %c0_i32 = arith.constant 0 : i32
    %c0_i32_0 = arith.constant 0 : i32
    return %c0_i32, %arg0 : i32, i32
  }
}

</mosaic_0001>

<llo_original>
// kernel: tpu_custom_call.1
$region0: #{tpu_custom_call.1}
  #allocation0 [shape = 'u32[]', space=smem, size = 0x4, offset = 0x4, fixed_abs, tag = 'smem constant byte address 0x4 - core index']
  #allocation1 [shape = 'u32[144,128]{1,0:T(1,128)}', space=vmem, size = 0x12000, scoped, tag = 'internal scratch']
  %s0 = inlined_call_operand.hbm [shape: f32[8,384], index: 0, kind: input, shape index: {}]
  %s1 = inlined_call_operand.vmem [shape: f32[1,384], index: 1, kind: input, shape index: {}]
  %s2 = inlined_call_operand.hbm [shape: f32[1,384], index: 2, kind: output, shape index: {}]
  %s3 = sld [smem:[#allocation0]]
  $region45: #{tpu_custom_call.1} parent=0
    _
  %s5 = ssub.s32 1, %s3
  %s6 = scalar_select 0, %s5, %s3
  $region1: #{tpu_custom_call.1} parent=0
    #allocation2 [shape = 'u8[8192]{0}', space=vmem, size = 0x2000, scoped, tag = 'input window, operand 0']
    #allocation3 [shape = 's32[2]{0}', space=sflag, size = 0x8, scoped, tag = 'scoped memory for tpu_custom_call.1']
    #allocation4 [shape = 's32[2]{0}', space=sflag, size = 0x8, scoped, tag = 'scoped memory for tpu_custom_call.1']
    #allocation5 [shape = 'u8[1024]{0}', space=vmem, size = 0x400, scoped, tag = 'output window, operand 0']
    %7 = vsyncpa [#allocation3], 0
    %s8 = scalar_lea.sflag [#allocation3], 1
    %9 = vsyncpa %s8, 0
    %10 = vsyncpa [#allocation4], 0
    %s11 = scalar_lea.sflag [#allocation4], 1
    %12 = vsyncpa %s11, 0
    loop: start=0, step=1, limit=5
    $region2: #{tpu_custom_call.1} parent=1 // loop_pre_header
      _
    $region3: #{tpu_custom_call.1} parent=1 // loop_header
      %s14 = sphi 0, %s18
      %p15 = scmp.ge.s32.totalorder %s14, 5
      %s24 = sphi 0, %s26
      %s27 = sphi 0, %s24
      %s28 = sphi 0, %s27
      %s44 = sphi 0, %s28
      %s50 = sphi 0, %s52
      %s53 = sphi 0, %s50
      %s54 = sphi 0, %s53
      %s70 = sphi 0, %s54
      %s76 = sphi 0, %s78
      %s79 = sphi 0, %s76
      %s80 = sphi 0, %s79
      %s96 = sphi 0, %s80
    $region4: #{tpu_custom_call.1} parent=1 // loop_header_branch
      %17 = sbr.rel (%p15) target = $region8
    $region5: #{tpu_custom_call.1} parent=1 // loop_body
      %s19 = ssub.s32 %s14, 1
      %s20 = ssub.s32 %s14, 2
      %s21 = sadd.s32 %s14, 1
      %s22 = ssub.s32 %s14, %s21
      %p23 = scmp.eq.s32.totalorder %s22, 0
      %s25 = sadd.s32 %s24, 1
      %s26 = scalar_select %p23, %s24, %s25
      %p29 = pneg %p23
      %p30 = scmp.eq.s32.totalorder %s14, 2
      %p31 = por %p29, %p30
      %p32 = scmp.ne.s32.totalorder %s24, %s27
      %p33 = scmp.eq.s32.totalorder %s14, 0
      %p34 = por %p32, %p33
      %p35 = scmp.ne.s32.totalorder %s24, %s27
      %p36 = scmp.eq.s32.totalorder %s19, 2
      %p37 = por %p35, %p36
      %p38 = scmp.ne.s32.totalorder %s27, %s28
      %p39 = scmp.eq.s32.totalorder %s19, 0
      %p40 = por %p38, %p39
      %p41 = scmp.ne.s32.totalorder %s27, %s28
      %p42 = scmp.eq.s32.totalorder %s20, 2
      %p43 = por %p41, %p42
      %p45 = scmp.ne.s32.totalorder %s28, %s44
      %p46 = scmp.eq.s32.totalorder %s20, 0
      %p47 = por %p45, %p46
      %s48 = ssub.s32 %s14, %s21
      %p49 = scmp.eq.s32.totalorder %s48, 0
      %s51 = sadd.s32 %s50, 1
      %s52 = scalar_select %p49, %s50, %s51
      %p55 = pneg %p49
      %p56 = scmp.eq.s32.totalorder %s14, 2
      %p57 = por %p55, %p56
      %p58 = scmp.ne.s32.totalorder %s50, %s53
      %p59 = scmp.eq.s32.totalorder %s14, 0
      %p60 = por %p58, %p59
      %p61 = scmp.ne.s32.totalorder %s50, %s53
      %p62 = scmp.eq.s32.totalorder %s19, 2
      %p63 = por %p61, %p62
      %p64 = scmp.ne.s32.totalorder %s53, %s54
      %p65 = scmp.eq.s32.totalorder %s19, 0
      %p66 = por %p64, %p65
      %p67 = scmp.ne.s32.totalorder %s53, %s54
      %p68 = scmp.eq.s32.totalorder %s20, 2
      %p69 = por %p67, %p68
      %p71 = scmp.ne.s32.totalorder %s54, %s70
      %p72 = scmp.eq.s32.totalorder %s20, 0
      %p73 = por %p71, %p72
      %s74 = ssub.s32 %s14, %s21
      %p75 = scmp.eq.s32.totalorder %s74, 0
      %s77 = sadd.s32 %s76, 1
      %s78 = scalar_select %p75, %s76, %s77
      %p81 = pneg %p75
      %p82 = scmp.eq.s32.totalorder %s14, 2
      %p83 = por %p81, %p82
      %p84 = scmp.ne.s32.totalorder %s76, %s79
      %p85 = scmp.eq.s32.totalorder %s14, 0
      %p86 = por %p84, %p85
      %p87 = scmp.ne.s32.totalorder %s76, %s79
      %p88 = scmp.eq.s32.totalorder %s19, 2
      %p89 = por %p87, %p88
      %p90 = scmp.ne.s32.totalorder %s79, %s80
      %p91 = scmp.eq.s32.totalorder %s19, 0
      %p92 = por %p90, %p91
      %p93 = scmp.ne.s32.totalorder %s79, %s80
      %p94 = scmp.eq.s32.totalorder %s20, 2
      %p95 = por %p93, %p94
      %p97 = scmp.ne.s32.totalorder %s80, %s96
      %p98 = scmp.eq.s32.totalorder %s20, 0
      %p99 = por %p97, %p98
      %p100 = scmp.le.s32.totalorder 1, %s14
      %p101 = scmp.lt.s32.totalorder %s14, 4
      %p102 = pnand %p100, %p101
      %p103 = pneg %p102
      // Predicated region
      $region9: #{tpu_custom_call.1} parent=5 // pred_check
        _
      $region10: #{tpu_custom_call.1} parent=5 // pred_check_branch
        %105 = sbr.rel (%p102) target = $region12
      $region11: #{tpu_custom_call.1} parent=5 // pred_region
        %s106 = ssub.s32 %s14, 1
      $region12: #{tpu_custom_call.1} parent=5 // pred_fallthru
        _
      %p107 = scmp.lt.s32.totalorder %s14, 3
      // Predicated region
      $region13: #{tpu_custom_call.1} parent=5 // pred_check
        %p108 = pneg %p107
      $region14: #{tpu_custom_call.1} parent=5 // pred_check_branch
        %110 = sbr.rel (%p108) target = $region16
      $region15: #{tpu_custom_call.1} parent=5 // pred_region
        // Predicated region
        $region17: #{tpu_custom_call.1} parent=15 // pred_check
          %p111 = pneg %p34
        $region18: #{tpu_custom_call.1} parent=15 // pred_check_branch
          %113 = sbr.rel (%p111) target = $region20
        $region19: #{tpu_custom_call.1} parent=15 // pred_region
          %s114 = sand.u32 %s24, 1
          %s115 = scalar_lea.sflag [#allocation3], %s114
          %s116 = sand.u32 %s24, 1
          %s117 = smul.addr %s116, 8
          %s118 = scalar_lea.vmem [#allocation2], %s117
          %s120 = ssub.s32 128, 128
          %121 = vsyncadd %s115, %s120
          %s122 = smul.addr %s14, 128
          %s123 = scalar_lea.hbm %s0, %s122
          %s125 = sshll.u32 %s118, 4
          %s126 = int_to_ptr.vmem [resolvable:$true] %s125
          %128 = dma.hbm_to_vmem [thread:$0]  %s123, 128, %s126, %s115
        $region20: #{tpu_custom_call.1} parent=15 // pred_fallthru
          _
        // Predicated region
        $region21: #{tpu_custom_call.1} parent=15 // pred_check
          %p129 = pneg %p60
        $region22: #{tpu_custom_call.1} parent=15 // pred_check_branch
          %131 = sbr.rel (%p129) target = $region24
        $region23: #{tpu_custom_call.1} parent=15 // pred_region
          %p132 = scmp.lt.s32.totalorder %s14, 2
          %s133 = scalar_select %p132, %s14, 2
          %s134 = scalar_lea.vmem %s1, %s133
        $region24: #{tpu_custom_call.1} parent=15 // pred_fallthru
          _
      $region16: #{tpu_custom_call.1} parent=5 // pred_fallthru
        _
      %p135 = scmp.le.s32.totalorder 1, %s14
      %p136 = scmp.lt.s32.totalorder %s14, 4
      %p137 = pnand %p135, %p136
      %p138 = pneg %p137
      // Predicated region
      $region25: #{tpu_custom_call.1} parent=5 // pred_check
        _
      $region26: #{tpu_custom_call.1} parent=5 // pred_check_branch
        %140 = sbr.rel (%p137) target = $region28
      $region27: #{tpu_custom_call.1} parent=5 // pred_region
        %s141 = ssub.s32 %s14, 1
        %s142 = sand.u32 %s27, 1
        %s143 = scalar_lea.sflag [#allocation3], %s142
        %s144 = sand.u32 %s27, 1
        %s145 = smul.addr %s144, 8
        %s146 = scalar_lea.vmem [#allocation2], %s145
        // Predicated region
        $region29: #{tpu_custom_call.1} parent=27 // pred_check
          %p147 = pneg %p40
        $region30: #{tpu_custom_call.1} parent=27 // pred_check_branch
          %149 = sbr.rel (%p147) target = $region32
        $region31: #{tpu_custom_call.1} parent=27 // pred_region
          %150 = dma.done %s143, 128
        $region32: #{tpu_custom_call.1} parent=27 // pred_fallthru
          _
        %s151 = sand.u32 %s27, 1
        %s152 = scalar_lea.sflag [#allocation3], %s151
        %s153 = sand.u32 %s27, 1
        %s154 = smul.addr %s153, 8
        %s155 = scalar_lea.vmem [#allocation2], %s154
        %p156 = pneg %p40
        %p157 = pneg %p37
        %p158 = scmp.lt.s32.totalorder %s19, 2
        %s159 = scalar_select %p158, %s19, 2
        %s160 = scalar_lea.vmem %s1, %s159
        %p161 = pneg %p66
        %p162 = pneg %p63
        %p163 = pneg %p92
        %p164 = pneg %p89
        %s165 = sand.u32 %s79, 1
        %s166 = scalar_lea.sflag [#allocation4], %s165
        %s167 = sand.u32 %s79, 1
        %s168 = scalar_lea.vmem [#allocation5], %s167
        %p169 = scmp.lt.s32.totalorder %s19, 2
        %s170 = scalar_select %p169, %s19, 2
        %s171 = scalar_lea.vmem %s1, %s170
        %v172 = vld [vmem:[%s146] sm:$0xff]
        %v173 = vld [vmem:[%s171] sm:$0x1]
        %v174 = vrot.slane %v172, 4
        %v175 = vmax.f32 %v172, %v174
        %v176 = vrot.slane %v175, 2
        %v177 = vmax.f32 %v175, %v176
        %v178 = vrot.slane %v177, 1
        %v179 = vmax.f32 %v177, %v178
        %v180 = vsub.f32 %v172, %v179
        %v181 = vmul.f32 %v180, 1.442695
        %v182 = vpow.pop %v181
        %v183 = vrot.slane %v182, 4
        %v184 = vadd.f32 %v182, %v183
        %v185 = vrot.slane %v184, 2
        %v186 = vadd.f32 %v184, %v185
        %v187 = vrot.slane %v186, 1
        %v188 = vadd.f32 %v186, %v187
        %v189 = vlog2.pop %v188
        %v190 = vmul.f32 %v189, 0.6931472
        %v191 = vsub.f32 %v180, %v190
        %v192 = vsub.f32 %v188, %v182
        %v193 = vlog2.pop %v192
        %v194 = vmul.f32 %v193, 0.6931472
        %v195 = vsub.f32 %v194, %v190
        %v196 = vmul.f32 %v191, 1.442695
        %v197 = vpow.pop %v196
        %v198 = vsub.f32 1.0, %v197
        %v199 = vmul.f32 %v198, %v198
        %v200 = vmul.f32 %v199, -0.25
        %v203 = vunpack.c.l.s4 1966171168
        %v204 = vunpack.c.0.s8 %v203
        %v205 = vlaneseq
        %v206 = vshrl.u32 %v205, 7
        %v207 = vsub.s32 %v204, %v206
        %v208 = vrot.slane %v191, %v207
        %v209 = vcombine.high %v208, %v208
        %v211 = vunpack.c.l.s4 1966171168
        %v212 = vunpack.c.0.s8 %v211
        %v213 = vlaneseq
        %v214 = vshrl.u32 %v213, 7
        %v215 = vsub.s32 %v212, %v214
        %v216 = vrot.slane %v209, %v215
        %v218 = vmul.f32 %v173, %v216
        %v220 = vlaneseq
        %v221 = vshrl.u32 %v220, 7
        %v222 = vsub.s32 0, %v221
        %v223 = vrot.slane %v218, %v222
        %v225 = vmul.f32 %v200, %v223
        %v226 = vmul.f32 %v197, %v197
        %v227 = vmul.f32 %v226, 0.75
        %v228 = vsub.f32 1.0, %v173
        %v231 = vunpack.c.l.s4 1966171168
        %v232 = vunpack.c.0.s8 %v231
        %v233 = vlaneseq
        %v234 = vshrl.u32 %v233, 7
        %v235 = vsub.s32 %v232, %v234
        %v236 = vrot.slane %v195, %v235
        %v237 = vcombine.high %v236, %v236
        %v239 = vunpack.c.l.s4 1966171168
        %v240 = vunpack.c.0.s8 %v239
        %v241 = vlaneseq
        %v242 = vshrl.u32 %v241, 7
        %v243 = vsub.s32 %v240, %v242
        %v244 = vrot.slane %v237, %v243
        %v246 = vmul.f32 %v228, %v244
        %v248 = vlaneseq
        %v249 = vshrl.u32 %v248, 7
        %v250 = vsub.s32 0, %v249
        %v251 = vrot.slane %v246, %v250
        %v253 = vmul.f32 %v227, %v251
        %v254 = vsub.f32 %v225, %v253
        %255 = vst [vmem:[%s168 - $0x1] sm:$0x2] %v254
        %s256 = sand.u32 %s79, 1
        %s257 = scalar_lea.sflag [#allocation4], %s256
        %s258 = sand.u32 %s79, 1
        %s259 = scalar_lea.vmem [#allocation5], %s258
        // Predicated region
        $region33: #{tpu_custom_call.1} parent=27 // pred_check
          %p260 = pneg %p89
        $region34: #{tpu_custom_call.1} parent=27 // pred_check_branch
          %262 = sbr.rel (%p260) target = $region36
        $region35: #{tpu_custom_call.1} parent=27 // pred_region
          %s264 = ssub.s32 16, 16
          %265 = vsyncadd %s257, %s264
          %s266 = smul.addr %s19, 16
          %s267 = scalar_lea.hbm %s2, %s266
          %s269 = sshll.u32 %s259, 4
          %s270 = int_to_ptr.vmem [resolvable:$true] %s269
          %272 = dma.vmem_to_hbm [thread:$0]  %s270, 16, %s267, %s257
        $region36: #{tpu_custom_call.1} parent=27 // pred_fallthru
          _
      $region28: #{tpu_custom_call.1} parent=5 // pred_fallthru
        _
      %p273 = scmp.le.s32.totalorder 2, %s14
      // Predicated region
      $region37: #{tpu_custom_call.1} parent=5 // pred_check
        %p274 = pneg %p273
      $region38: #{tpu_custom_call.1} parent=5 // pred_check_branch
        %276 = sbr.rel (%p274) target = $region40
      $region39: #{tpu_custom_call.1} parent=5 // pred_region
        %s277 = ssub.s32 %s14, 2
        // Predicated region
        $region41: #{tpu_custom_call.1} parent=39 // pred_check
          %p278 = pneg %p95
        $region42: #{tpu_custom_call.1} parent=39 // pred_check_branch
          %280 = sbr.rel (%p278) target = $region44
        $region43: #{tpu_custom_call.1} parent=39 // pred_region
          %s281 = sand.u32 %s80, 1
          %s282 = scalar_lea.sflag [#allocation4], %s281
          %s283 = sand.u32 %s80, 1
          %s284 = scalar_lea.vmem [#allocation5], %s283
          %285 = dma.done %s282, 16
        $region44: #{tpu_custom_call.1} parent=39 // pred_fallthru
          _
      $region40: #{tpu_custom_call.1} parent=5 // pred_fallthru
        _
    $region6: #{tpu_custom_call.1} parent=1 // loop_footer
      %s18 = sadd.s32 1, %s14
    $region7: #{tpu_custom_call.1} parent=1 // loop_footer_branch
      %13 = sbr.rel target = $region3
    $region8: #{tpu_custom_call.1} parent=1 // loop_exit
      _
    %286 = vsyncpa [#allocation3], 1
    %s287 = scalar_lea.sflag [#allocation3], 1
    %288 = vsyncpa %s287, 1
    %289 = vsyncpa [#allocation4], 1
    %s290 = scalar_lea.sflag [#allocation4], 1
    %291 = vsyncpa %s290, 1

</llo_original>
